<compile_context>
chip_gen: v6e
topology: v6e:2x2x1
jax: 0.10.0
libtpu: 0.0.40
codegen_flags: <defaults>
</compile_context>

<pallas_src>
import jax
import jax.numpy as jnp
from jax.experimental import pallas as pl
from jax.experimental.pallas import tpu as pltpu

EPS = 1e-10


def _bma_ce_kernel(x_ref, tgt_ref, out_ref):
    """One grid step = TB batch rows.

    x_ref:   VMEM (TB, S, C)  MC-sample logits (any float dtype in HBM)
    tgt_ref: VMEM (TB, 1)     int32 target class per batch row
    out_ref: VMEM (TB, 1)     f32 per-row NLL (disjoint block per grid step)
    """
    x = x_ref[...].astype(jnp.float32)                        # (TB, S, C)
    S = x.shape[1]
    C = x.shape[2]

    # Stable-softmax denominator: exp(x - max) summed over classes.  The exp
    # tile feeds only this reduction (streamable, no full-tile temp kept).
    m = jnp.max(x, axis=-1, keepdims=True)                    # (TB, S, 1)
    se = jnp.sum(jnp.exp(x - m), axis=-1, keepdims=True)      # (TB, S, 1)

    # Target-class logit gathered from x with a tiny (1, 1, C) class iota
    # (broadcast inside the compare; no full-tile int32 temporary).
    t = tgt_ref[...][:, :, None]                               # (TB, 1, 1) int32
    cls = jax.lax.broadcasted_iota(jnp.int32, (1, 1, C), 2)    # (1, 1, C)
    x_t = jnp.sum(jnp.where(cls == t, x, 0.0),
                  axis=-1, keepdims=True)                      # (TB, S, 1)
    e_t = jnp.exp(x_t - m)                                     # (TB, S, 1): TB*S exps

    # 1/se on the EUP (approx) + one Newton step -> ~exact-divide accuracy.
    r = pl.reciprocal(se, approx=True)
    r = r * (2.0 - se * r)

    p_t = e_t * r                                              # softmax[b, s, target]
    p_bma = jnp.sum(p_t, axis=1) * (1.0 / S)                   # (TB, 1)  BMA over MC
    out_ref[...] = -jnp.log(p_bma + EPS)


def bma_cross_entropy_loss(samples, targets, *, block_b=None):
    """samples: (B, S, C) float (f32 or bf16); targets: (B,) int.

    Returns the scalar f32 BMA cross-entropy loss.  Passing bf16 `samples`
    halves HBM traffic (recommended on v5e); compute is always f32 in-kernel.
    """
    B, S, C = samples.shape
    in_itemsize = samples.dtype.itemsize

    # Real per-step VMEM cost per batch row: 2x input block (double-buffered
    # pipeline) + ~3x f32 full-tile working set (f32 cast, exp stream, fused
    # select temporaries).
    cost_per_row = 2 * S * C * in_itemsize + 3 * S * C * 4

    if block_b is None:
        target_working_set = 32 * 1024 * 1024  # safe on v5e/v6e/v7x
        block_b = max(1, target_working_set // cost_per_row)
    block_b = int(min(block_b, B))
    if block_b < B:
        # Keep the sublane-facing output/target block dim a multiple of 8.
        block_b = max(8, (block_b // 8) * 8)
        block_b = min(block_b, B)

    num_blocks = pl.cdiv(B, block_b)
    targets_2d = targets.astype(jnp.int32).reshape(B, 1)

    # Explicit scoped-VMEM request sized from the *final* block_b (covers the
    # small-B / inflation paths), clamped to v7x's 64 MiB physical ceiling.
    working_set = block_b * cost_per_row + 2 * 1024 * 1024
    vmem_limit = int(min(max(working_set, 16 * 1024 * 1024), 64 * 1024 * 1024))

    cost = pl.CostEstimate(
        flops=int(5 * B * S * C),
        transcendentals=int(B * S * C + 3 * B * S + B),
        bytes_accessed=int(B * S * C * in_itemsize + 8 * B),
    )

    nll = pl.pallas_call(
        _bma_ce_kernel,
        out_shape=jax.ShapeDtypeStruct((B, 1), jnp.float32),
        grid=(num_blocks,),
        in_specs=[
            pl.BlockSpec((block_b, S, C), lambda i: (i, 0, 0)),
            pl.BlockSpec((block_b, 1), lambda i: (i, 0)),
        ],
        out_specs=pl.BlockSpec((block_b, 1), lambda i: (i, 0)),
        compiler_params=pltpu.CompilerParams(
            # Disjoint per-step output blocks -> the batch axis can be sharded
            # across both TensorCores on megacore / v7x.
            dimension_semantics=("parallel",),
            vmem_limit_bytes=vmem_limit,
        ),
        cost_estimate=cost,
    )(samples, targets_2d)

    # Final mean over the batch in plain JAX, in f32.  Ragged-tail rows of the
    # last partial block are never written back, so `nll` is exactly (B, 1).
    return jnp.mean(nll[:, 0])


if __name__ == "__main__":
    key = jax.random.PRNGKey(0)
    k1, k2 = jax.random.split(key)

    B, S, C = 4, 8, 32  # batch, num_mc_samples, num_classes
    samples = jax.random.normal(k1, (B, S, C), dtype=jnp.float32)
    targets = jax.random.randint(k2, (B,), 0, C, dtype=jnp.int32)

    loss = bma_cross_entropy_loss(samples, targets)
    loss = jax.block_until_ready(loss)

    # pure-JAX reference for the same forward path
    probs = jax.nn.softmax(samples, axis=-1).mean(axis=1)
    logp = jnp.log(probs + EPS)
    ref = -jnp.mean(logp[jnp.arange(B), targets])

    assert jnp.allclose(loss, ref, atol=1e-5, rtol=1e-5), (float(loss), float(ref))
    print("KERNEL_OK")
</pallas_src>

<mosaic_0001>
module attributes {stable_mosaic.version = 11 : i64} {
  func.func @_bma_ce_kernel(%arg0: i32, %arg1: memref<4x8x32xf32, #tpu.memory_space<vmem>>, %arg2: memref<4x1xi32, #tpu.memory_space<vmem>>, %arg3: memref<4x1xf32, #tpu.memory_space<vmem>>) attributes {dimension_semantics = [#tpu.dimension_semantics<parallel>], iteration_bounds = array<i64: 1>, scalar_prefetch = 0 : i64, scratch_operands = 0 : i64, tpu.core_type = #tpu.core_type<tc>, window_params = [{transform_indices = @transform_0, window_bounds = array<i64: 4, 8, 32>}, {transform_indices = @transform_1, window_bounds = array<i64: 4, 1>}, {transform_indices = @transform_2, window_bounds = array<i64: 4, 1>}]} {
    %c0 = arith.constant 0 : index
    %c0_0 = arith.constant 0 : index
    %c0_1 = arith.constant 0 : index
    %0 = vector.load %arg1[%c0, %c0_0, %c0_1] : memref<4x8x32xf32, #tpu.memory_space<vmem>>, vector<4x8x32xf32>
    %cst = arith.constant dense<0xFF800000> : vector<4x8xf32>
    %1 = vector.multi_reduction <maximumf>, %0, %cst [2] : vector<4x8x32xf32> to vector<4x8xf32>
    %2 = vector.shape_cast %1 : vector<4x8xf32> to vector<4x8x1xf32>
    %3 = vector.broadcast %2 : vector<4x8x1xf32> to vector<4x8x32xf32>
    %4 = arith.subf %0, %3 : vector<4x8x32xf32>
    %5 = math.exp %4 : vector<4x8x32xf32>
    %cst_2 = arith.constant dense<0.000000e+00> : vector<4x8xf32>
    %6 = vector.multi_reduction <add>, %5, %cst_2 [2] : vector<4x8x32xf32> to vector<4x8xf32>
    %7 = vector.shape_cast %6 : vector<4x8xf32> to vector<4x8x1xf32>
    %c0_3 = arith.constant 0 : index
    %c0_4 = arith.constant 0 : index
    %8 = vector.load %arg2[%c0_3, %c0_4] : memref<4x1xi32, #tpu.memory_space<vmem>>, vector<4x1xi32>
    %9 = vector.shape_cast %8 : vector<4x1xi32> to vector<4x1x1xi32>
    %10 = tpu.iota {dimensions = array<i32: 2>} : vector<1x1x32xi32>
    %11 = vector.broadcast %10 : vector<1x1x32xi32> to vector<4x1x32xi32>
    %12 = vector.broadcast %9 : vector<4x1x1xi32> to vector<4x1x32xi32>
    %13 = arith.cmpi eq, %11, %12 : vector<4x1x32xi32>
    %cst_5 = arith.constant 0.000000e+00 : f32
    %14 = vector.shape_cast %13 : vector<4x1x32xi1> to vector<4x1x32xi1>
    %15 = vector.broadcast %14 : vector<4x1x32xi1> to vector<4x8x32xi1>
    %16 = vector.broadcast %cst_5 : f32 to vector<4x8x32xf32>
    %17 = arith.select %15, %0, %16 : vector<4x8x32xi1>, vector<4x8x32xf32>
    %cst_6 = arith.constant dense<0.000000e+00> : vector<4x8xf32>
    %18 = vector.multi_reduction <add>, %17, %cst_6 [2] : vector<4x8x32xf32> to vector<4x8xf32>
    %19 = vector.shape_cast %18 : vector<4x8xf32> to vector<4x8x1xf32>
    %20 = arith.subf %19, %2 : vector<4x8x1xf32>
    %21 = math.exp %20 : vector<4x8x1xf32>
    %22 = tpu.reciprocal %7 {approx = true} : vector<4x8x1xf32> -> vector<4x8x1xf32>
    %23 = arith.mulf %7, %22 : vector<4x8x1xf32>
    %cst_7 = arith.constant 2.000000e+00 : f32
    %24 = vector.broadcast %cst_7 : f32 to vector<4x8x1xf32>
    %25 = arith.subf %24, %23 : vector<4x8x1xf32>
    %26 = arith.mulf %22, %25 : vector<4x8x1xf32>
    %27 = arith.mulf %21, %26 : vector<4x8x1xf32>
    %cst_8 = arith.constant dense<0.000000e+00> : vector<4x1xf32>
    %28 = vector.multi_reduction <add>, %27, %cst_8 [1] : vector<4x8x1xf32> to vector<4x1xf32>
    %cst_9 = arith.constant 1.250000e-01 : f32
    %29 = vector.broadcast %cst_9 : f32 to vector<4x1xf32>
    %30 = arith.mulf %28, %29 : vector<4x1xf32>
    %cst_10 = arith.constant 1.000000e-10 : f32
    %31 = vector.broadcast %cst_10 : f32 to vector<4x1xf32>
    %32 = arith.addf %30, %31 : vector<4x1xf32>
    %33 = math.log %32 : vector<4x1xf32>
    %cst_11 = arith.constant 0.000000e+00 : f32
    %34 = vector.broadcast %cst_11 : f32 to vector<4x1xf32>
    %35 = arith.subf %34, %33 : vector<4x1xf32>
    %c0_12 = arith.constant 0 : index
    %c0_13 = arith.constant 0 : index
    %36 = vector.load %arg3[%c0_12, %c0_13] : memref<4x1xf32, #tpu.memory_space<vmem>>, vector<4x1xf32>
    tpu.vector_store %arg3[%c0_12, %c0_13], %35 {strides = array<i32>} : memref<4x1xf32, #tpu.memory_space<vmem>>, vector<4x1xf32>,
    return
  }
  func.func @transform_0(%arg0: i32) -> (i32, i32, i32) {
    %c0_i32 = arith.constant 0 : i32
    %c0_i32_0 = arith.constant 0 : i32
    %c0_i32_1 = arith.constant 0 : i32
    return %arg0, %c0_i32, %c0_i32_0 : i32, i32, i32
  }
  func.func @transform_1(%arg0: i32) -> (i32, i32) {
    %c0_i32 = arith.constant 0 : i32
    %c0_i32_0 = arith.constant 0 : i32
    return %arg0, %c0_i32 : i32, i32
  }
  func.func @transform_2(%arg0: i32) -> (i32, i32) {
    %c0_i32 = arith.constant 0 : i32
    %c0_i32_0 = arith.constant 0 : i32
    return %arg0, %c0_i32 : i32, i32
  }
}

</mosaic_0001>

<llo_original>
// kernel: tpu_custom_call.1
$region0: #{tpu_custom_call.1}
  #allocation0 [shape = 'u32[]', space=smem, size = 0x4, offset = 0x4, fixed_abs, tag = 'smem constant byte address 0x4 - core index']
  #allocation1 [shape = 'u32[144,128]{1,0:T(1,128)}', space=vmem, size = 0x12000, scoped, tag = 'internal scratch']
  %s0 = inlined_call_operand.hbm [shape: f32[4,8,32], index: 0, kind: input, shape index: {}]
  %s1 = inlined_call_operand.vmem [shape: s32[4,1], index: 1, kind: input, shape index: {}]
  %s2 = inlined_call_operand.vmem [shape: f32[4,1], index: 2, kind: output, shape index: {}]
  %s3 = sld [smem:[#allocation0]]
  $region22: #{tpu_custom_call.1} parent=0
    _
  %s5 = ssub.s32 1, %s3
  %s6 = scalar_select 0, %s5, %s3
  $region1: #{tpu_custom_call.1} parent=0
    #allocation2 [shape = 'u8[16384]{0}', space=vmem, size = 0x4000, scoped, tag = 'input window, operand 0, single buffered']
    #allocation3 [shape = 's32[1]{0}', space=sflag, size = 0x4, scoped, tag = 'scoped memory for tpu_custom_call.1']
    %7 = vsyncpa [#allocation3], 0
    // Predicated region
    $region2: #{tpu_custom_call.1} parent=1 // pred_check
      _
    $region3: #{tpu_custom_call.1} parent=1 // pred_check_branch
      %9 = sbr.rel (0) target = $region5
    $region4: #{tpu_custom_call.1} parent=1 // pred_region
      %s11 = ssub.s32 512, 512
      %12 = vsyncadd [#allocation3], %s11
      %s13 = sshll.u32 [#allocation2], 4
      %s14 = int_to_ptr.vmem [resolvable:$true] %s13
      %19 = dma.hbm_to_vmem [thread:$0]  %s0, 512, %s14, [#allocation3], 128, 128, 8
    $region5: #{tpu_custom_call.1} parent=1 // pred_fallthru
      _
    // Predicated region
    $region6: #{tpu_custom_call.1} parent=1 // pred_check
      _
    $region7: #{tpu_custom_call.1} parent=1 // pred_check_branch
      %21 = sbr.rel (0) target = $region9
    $region8: #{tpu_custom_call.1} parent=1 // pred_region
      _
    $region9: #{tpu_custom_call.1} parent=1 // pred_fallthru
      _
    // Predicated region
    $region10: #{tpu_custom_call.1} parent=1 // pred_check
      _
    $region11: #{tpu_custom_call.1} parent=1 // pred_check_branch
      %23 = sbr.rel (0) target = $region13
    $region12: #{tpu_custom_call.1} parent=1 // pred_region
      %24 = dma.done [#allocation3], 512
    $region13: #{tpu_custom_call.1} parent=1 // pred_fallthru
      _
    %v25 = vld [vmem:[#allocation2] sm:$0xff]
    %v26 = vld [vmem:[#allocation2 + $0x8] sm:$0xff]
    %v27 = vld [vmem:[#allocation2 + $0x10] sm:$0xff]
    %v28 = vld [vmem:[#allocation2 + $0x18] sm:$0xff]
    %vm29 = vcmask 261120
    %v30 = vsel %vm29, %v25, -inf
    %31 = vmax.xlane.f32.xlu0 %v30
    %v32 = vpop.xlane.xlu0 %31
    %v33 = vsel %vm29, %v26, -inf
    %34 = vmax.xlane.f32.xlu0 %v33
    %v35 = vpop.xlane.xlu0 %34
    %v36 = vsel %vm29, %v27, -inf
    %37 = vmax.xlane.f32.xlu0 %v36
    %v38 = vpop.xlane.xlu0 %37
    %v39 = vsel %vm29, %v28, -inf
    %40 = vmax.xlane.f32.xlu0 %v39
    %v41 = vpop.xlane.xlu0 %40
    %v42 = vsub.f32 %v25, %v32
    %v43 = vsub.f32 %v26, %v35
    %v44 = vsub.f32 %v27, %v38
    %v45 = vsub.f32 %v28, %v41
    %v46 = vmul.f32 %v42, 1.442695
    %v47 = vpow.pop %v46
    %v48 = vmul.f32 %v43, 1.442695
    %v49 = vpow.pop %v48
    %v50 = vmul.f32 %v44, 1.442695
    %v51 = vpow.pop %v50
    %v52 = vmul.f32 %v45, 1.442695
    %v53 = vpow.pop %v52
    %v54 = vsel %vm29, %v47, 0.0
    %55 = vadd.xlane.f32.xlu0 %v54
    %v56 = vpop.xlane.xlu0 %55
    %v57 = vsel %vm29, %v49, 0.0
    %58 = vadd.xlane.f32.xlu0 %v57
    %v59 = vpop.xlane.xlu0 %58
    %v60 = vsel %vm29, %v51, 0.0
    %61 = vadd.xlane.f32.xlu0 %v60
    %v62 = vpop.xlane.xlu0 %61
    %v63 = vsel %vm29, %v53, 0.0
    %64 = vadd.xlane.f32.xlu0 %v63
    %v65 = vpop.xlane.xlu0 %64
    %v66 = vld [vmem:[%s1] sm:$0xf]
    %v68 = vunpack.c.l.s4 1966171168
    %v69 = vunpack.c.0.s8 %v68
    %v70 = vlaneseq
    %v71 = vshrl.u32 %v70, 7
    %v72 = vsub.s32 %v69, %v71
    %v73 = vrot.slane %v66, %v72
    %v74 = vcombine.high %v73, %v73
    %v76 = vunpack.c.l.s4 1966171168
    %v77 = vunpack.c.0.s8 %v76
    %v78 = vlaneseq
    %v79 = vshrl.u32 %v78, 7
    %v80 = vsub.s32 %v77, %v79
    %v81 = vrot.slane %v73, %v80
    %v83 = vunpack.c.l.s4 1966171168
    %v84 = vunpack.c.0.s8 %v83
    %v85 = vlaneseq
    %v86 = vshrl.u32 %v85, 7
    %v87 = vsub.s32 %v84, %v86
    %v88 = vrot.slane %v74, %v87
    %v89 = vcombine.high %v81, %v81
    %v90 = vcombine.high %v88, %v88
    %v91 = vlaneseq
    %v92 = vand.u32 %v91, 127
    %93 = vset.pattern.permute.xlu0 0
    %94 = vperm.xlu0 %93, %v81
    %v95 = vpop.permute.xlu0 %94
    %v96 = vlaneseq
    %v97 = vshrl.u32 %v96, 7
    %v98 = vsub.s32 0, %v97
    %v99 = vrot.slane %v95, %v98
    %100 = vset.pattern.permute.xlu0 0
    %101 = vperm.xlu0 %100, %v88
    %v102 = vpop.permute.xlu0 %101
    %v103 = vlaneseq
    %v104 = vshrl.u32 %v103, 7
    %v105 = vsub.s32 0, %v104
    %v106 = vrot.slane %v102, %v105
    %107 = vset.pattern.permute.xlu0 0
    %108 = vperm.xlu0 %107, %v89
    %v109 = vpop.permute.xlu0 %108
    %v110 = vlaneseq
    %v111 = vshrl.u32 %v110, 7
    %v112 = vsub.s32 0, %v111
    %v113 = vrot.slane %v109, %v112
    %114 = vset.pattern.permute.xlu0 0
    %115 = vperm.xlu0 %114, %v90
    %v116 = vpop.permute.xlu0 %115
    %v117 = vlaneseq
    %v118 = vshrl.u32 %v117, 7
    %v119 = vsub.s32 0, %v118
    %v120 = vrot.slane %v116, %v119
    %vm121 = vcmp.eq.s32.totalorder %v92, %v99
    %vm122 = vcmp.eq.s32.totalorder %v92, %v106
    %vm123 = vcmp.eq.s32.totalorder %v92, %v113
    %vm124 = vcmp.eq.s32.totalorder %v92, %v120
    %v125 = vsel %vm121, 1, 0
    %v126 = vsel %vm122, 1, 0
    %v127 = vsel %vm123, 1, 0
    %v128 = vsel %vm124, 1, 0
    %vm129 = vcmp.eq.s32.totalorder %v125, 1
    %vm130 = vcmp.eq.s32.totalorder %v126, 1
    %vm131 = vcmp.eq.s32.totalorder %v127, 1
    %vm132 = vcmp.eq.s32.totalorder %v128, 1
    %v133 = vsel %vm129, %v25, 0.0
    %v134 = vsel %vm130, %v26, 0.0
    %v135 = vsel %vm131, %v27, 0.0
    %v136 = vsel %vm132, %v28, 0.0
    %v137 = vsel %vm29, %v133, 0.0
    %138 = vadd.xlane.f32.xlu0 %v137
    %v139 = vpop.xlane.xlu0 %138
    %v140 = vsel %vm29, %v134, 0.0
    %141 = vadd.xlane.f32.xlu0 %v140
    %v142 = vpop.xlane.xlu0 %141
    %v143 = vsel %vm29, %v135, 0.0
    %144 = vadd.xlane.f32.xlu0 %v143
    %v145 = vpop.xlane.xlu0 %144
    %v146 = vsel %vm29, %v136, 0.0
    %147 = vadd.xlane.f32.xlu0 %v146
    %v148 = vpop.xlane.xlu0 %147
    %v149 = vsub.f32 %v139, %v32
    %v150 = vsub.f32 %v142, %v35
    %v151 = vsub.f32 %v145, %v38
    %v152 = vsub.f32 %v148, %v41
    %v153 = vmul.f32 %v149, 1.442695
    %v154 = vpow.pop %v153
    %v155 = vmul.f32 %v150, 1.442695
    %v156 = vpow.pop %v155
    %v157 = vmul.f32 %v151, 1.442695
    %v158 = vpow.pop %v157
    %v159 = vmul.f32 %v152, 1.442695
    %v160 = vpow.pop %v159
    %v161 = vrcp.pop %v56
    %v162 = vrcp.pop %v59
    %v163 = vrcp.pop %v62
    %v164 = vrcp.pop %v65
    %v165 = vmul.f32 %v56, %v161
    %v166 = vmul.f32 %v59, %v162
    %v167 = vmul.f32 %v62, %v163
    %v168 = vmul.f32 %v65, %v164
    %v169 = vsub.f32 2.0, %v165
    %v170 = vsub.f32 2.0, %v166
    %v171 = vsub.f32 2.0, %v167
    %v172 = vsub.f32 2.0, %v168
    %v173 = vmul.f32 %v161, %v169
    %v174 = vmul.f32 %v162, %v170
    %v175 = vmul.f32 %v163, %v171
    %v176 = vmul.f32 %v164, %v172
    %v177 = vmul.f32 %v154, %v173
    %v178 = vmul.f32 %v156, %v174
    %v179 = vmul.f32 %v158, %v175
    %v180 = vmul.f32 %v160, %v176
    %v181 = vrot.slane %v177, 4
    %v182 = vadd.f32 %v177, %v181
    %v183 = vrot.slane %v182, 2
    %v184 = vadd.f32 %v182, %v183
    %v185 = vrot.slane %v184, 1
    %v186 = vadd.f32 %v184, %v185
    %v187 = vrot.slane %v178, 4
    %v188 = vadd.f32 %v178, %v187
    %v189 = vrot.slane %v188, 2
    %v190 = vadd.f32 %v188, %v189
    %v191 = vrot.slane %v190, 1
    %v192 = vadd.f32 %v190, %v191
    %v193 = vrot.slane %v179, 4
    %v194 = vadd.f32 %v179, %v193
    %v195 = vrot.slane %v194, 2
    %v196 = vadd.f32 %v194, %v195
    %v197 = vrot.slane %v196, 1
    %v198 = vadd.f32 %v196, %v197
    %v199 = vrot.slane %v180, 4
    %v200 = vadd.f32 %v180, %v199
    %v201 = vrot.slane %v200, 2
    %v202 = vadd.f32 %v200, %v201
    %v203 = vrot.slane %v202, 1
    %v204 = vadd.f32 %v202, %v203
    %v205 = vmul.f32 %v186, 0.125
    %v206 = vmul.f32 %v192, 0.125
    %v207 = vmul.f32 %v198, 0.125
    %v208 = vmul.f32 %v204, 0.125
    %v209 = vadd.f32 %v205, 1e-10
    %v210 = vadd.f32 %v206, 1e-10
    %v211 = vadd.f32 %v207, 1e-10
    %v212 = vadd.f32 %v208, 1e-10
    %v213 = vlog2.pop %v209
    %v214 = vmul.f32 %v213, 0.6931472
    %v215 = vlog2.pop %v210
    %v216 = vmul.f32 %v215, 0.6931472
    %v217 = vlog2.pop %v211
    %v218 = vmul.f32 %v217, 0.6931472
    %v219 = vlog2.pop %v212
    %v220 = vmul.f32 %v219, 0.6931472
    %v221 = vsub.f32 0.0, %v214
    %v222 = vsub.f32 0.0, %v216
    %v223 = vsub.f32 0.0, %v218
    %v224 = vsub.f32 0.0, %v220
    %vm229 = vcmask 1041409
    %v230 = vsel %vm229, %v222, %v221
    %vm231 = vcmask 1042434
    %v232 = vsel %vm231, %v223, %v230
    %vm233 = vcmask 1043459
    %v234 = vsel %vm233, %v224, %v232
    %vm236 = vcmask 3072
    %237 = vst.msk [vmem:[%s2] sm:$0xf] %vm236, %v234
    // Predicated region
    $region14: #{tpu_custom_call.1} parent=1 // pred_check
      _
    $region15: #{tpu_custom_call.1} parent=1 // pred_check_branch
      %239 = sbr.rel (0) target = $region17
    $region16: #{tpu_custom_call.1} parent=1 // pred_region
      _
    $region17: #{tpu_custom_call.1} parent=1 // pred_fallthru
      _
    // Predicated region
    $region18: #{tpu_custom_call.1} parent=1 // pred_check
      _
    $region19: #{tpu_custom_call.1} parent=1 // pred_check_branch
      %241 = sbr.rel (0) target = $region21
    $region20: #{tpu_custom_call.1} parent=1 // pred_region
      _
    $region21: #{tpu_custom_call.1} parent=1 // pred_fallthru
      _
    %242 = vsyncpa [#allocation3], 1

</llo_original>
